<compile_context>
chip_gen: v7x
topology: tpu7x:2x2x1
jax: 0.10.0
libtpu: 0.0.40
codegen_flags: <defaults>
</compile_context>

<pallas_src>
import jax
import jax.numpy as jnp
from jax.experimental import pallas as pl
from jax.experimental.pallas import tpu as pltpu


def _bayes_linear_kernel(x_ref, w_mu_ref, w_var_ref, b_mu_ref, b_var_ref,
                         zeta_ref, out_ref, gamma_acc, delta_acc):
    k = pl.program_id(2)

    @pl.when(k == 0)
    def _init():
        # Initialize accumulators with the broadcast biases (saves epilogue adds).
        zeros = jnp.zeros(gamma_acc.shape, dtype=jnp.float32)
        gamma_acc[...] = zeros + b_mu_ref[...]     # (tm, tn) <- (1, tn) broadcast
        delta_acc[...] = zeros + b_var_ref[...]

    # One X tile feeds both matmuls; x*x is computed once per K step in f32
    # and cast to the weight dtype (bf16) for the MXU.
    x = x_ref[...]                                  # (tm, tk) f32
    x_w = x.astype(w_mu_ref.dtype)
    x2_w = (x * x).astype(w_var_ref.dtype)
    gamma_acc[...] += jnp.dot(x_w, w_mu_ref[...],
                              preferred_element_type=jnp.float32)
    delta_acc[...] += jnp.dot(x2_w, w_var_ref[...],
                              preferred_element_type=jnp.float32)

    @pl.when(k == pl.num_programs(2) - 1)
    def _finalize():
        # Clamp: delta is mathematically >= 0 but bf16/f32 rounding can dip below.
        delta = jnp.maximum(delta_acc[...], 0.0)
        out_ref[...] = (gamma_acc[...]
                        + jnp.sqrt(delta) * zeta_ref[...]).astype(out_ref.dtype)


def _round_up(v, m):
    return ((v + m - 1) // m) * m


def _pad_to(a, shape):
    pads = [(0, s - d) for d, s in zip(a.shape, shape)]
    if all(p == (0, 0) for p in pads):
        return a
    return jnp.pad(a, pads)


def bayesian_linear_forward(x, w_mu, w_var, b_mu, b_var, zeta,
                            *, tm=None, tn=None, tk=None):
    """Local re-parameterization forward.

    x: (B, fan_in) f32; w_mu/w_var: (fan_in, fan_out) (f32 or bf16);
    b_mu/b_var: (fan_out,) or (1, fan_out); zeta: (1, fan_out).
    Returns (B, fan_out) f32.
    """
    batch, fan_in = x.shape
    fan_out = w_mu.shape[1]

    # Generation-friendly default tiles: lane-dense N, modest K, M multiple of 8.
    # (Small enough to fit v7x's 64 MiB VMEM with double buffering; override
    #  with larger tn/tk on v6e's 128 MiB if desired.)
    tm = tm if tm is not None else min(256, _round_up(batch, 8))
    tn = tn if tn is not None else min(512, _round_up(fan_out, 128))
    tk = tk if tk is not None else min(512, _round_up(fan_in, 128))

    m_p = _round_up(batch, tm)
    n_p = _round_up(fan_out, tn)
    k_p = _round_up(fan_in, tk)

    x_p = _pad_to(x.astype(jnp.float32), (m_p, k_p))
    w_mu_p = _pad_to(w_mu, (k_p, n_p))
    w_var_p = _pad_to(w_var, (k_p, n_p))
    b_mu_p = _pad_to(jnp.asarray(b_mu, jnp.float32).reshape(1, -1), (1, n_p))
    b_var_p = _pad_to(jnp.asarray(b_var, jnp.float32).reshape(1, -1), (1, n_p))
    zeta_p = _pad_to(jnp.asarray(zeta, jnp.float32).reshape(1, -1), (1, n_p))

    grid = (m_p // tm, n_p // tn, k_p // tk)

    out = pl.pallas_call(
        _bayes_linear_kernel,
        out_shape=jax.ShapeDtypeStruct((m_p, n_p), jnp.float32),
        grid_spec=pltpu.PrefetchScalarGridSpec(
            num_scalar_prefetch=0,
            grid=grid,
            in_specs=[
                pl.BlockSpec((tm, tk), lambda i, j, k: (i, k)),   # X
                pl.BlockSpec((tk, tn), lambda i, j, k: (k, j)),   # W_mu
                pl.BlockSpec((tk, tn), lambda i, j, k: (k, j)),   # W_var
                pl.BlockSpec((1, tn), lambda i, j, k: (0, j)),    # b_mu (K-invariant)
                pl.BlockSpec((1, tn), lambda i, j, k: (0, j)),    # b_var (K-invariant)
                pl.BlockSpec((1, tn), lambda i, j, k: (0, j)),    # zeta (K-invariant)
            ],
            out_specs=pl.BlockSpec((tm, tn), lambda i, j, k: (i, j)),
            scratch_shapes=[
                pltpu.VMEM((tm, tn), jnp.float32),   # gamma accumulator
                pltpu.VMEM((tm, tn), jnp.float32),   # delta accumulator
            ],
        ),
        compiler_params=pltpu.CompilerParams(
            dimension_semantics=("parallel", "parallel", "arbitrary"),
            vmem_limit_bytes=48 << 20,
        ),
    )(x_p, w_mu_p, w_var_p, b_mu_p, b_var_p, zeta_p)

    return out[:batch, :fan_out]


def _rho2var(rho):
    # softplus(rho)^2, same as torch.log(1 + exp(rho)).pow(2)
    return jnp.square(jnp.log1p(jnp.exp(rho)))


if __name__ == "__main__":
    # Small shapes that still exercise a multi-step (M, N, K) grid + padding:
    # batch=12 pads to 16 (tm=8), fan_in=200 pads to 256 (tk=128), fan_out=384 (tn=128).
    batch, fan_in, fan_out = 12, 200, 384
    tm, tn, tk = 8, 128, 128

    key = jax.random.PRNGKey(0)
    k_x, k_wmu, k_bmu, k_zeta = jax.random.split(key, 4)

    # Deterministic parameter init matching the module's __init__:
    #   W_mu ~ N(0, 1), W_rho = log(exp(0.5) - 1)  (=> softplus(W_rho) = 0.5)
    #   b_mu ~ N(0, 1), b_rho = log(exp(0.5) - 1)
    w_mu = jax.random.normal(k_wmu, (fan_in, fan_out), dtype=jnp.float32)
    w_rho = jnp.full((fan_in, fan_out), jnp.log(jnp.exp(0.5) - 1.0),
                     dtype=jnp.float32)
    b_mu = jax.random.normal(k_bmu, (fan_out,), dtype=jnp.float32)
    b_rho = jnp.full((fan_out,), jnp.log(jnp.exp(0.5) - 1.0), dtype=jnp.float32)

    w_var = _rho2var(w_rho)                       # (fan_in, fan_out), == 0.25
    b_var = _rho2var(b_rho)                       # (fan_out,),        == 0.25

    x = jax.random.normal(k_x, (batch, fan_in), dtype=jnp.float32)

    # share_paremeters_among_samples=True: one zeta row shared over the batch.
    # TODO(synk): zeta is sampled host-side with jax.random (the torch module
    # samples it in forward); an in-kernel pltpu.prng path could fuse this.
    zeta = jax.random.normal(k_zeta, (1, fan_out), dtype=jnp.float32)

    # Weights in bf16 (HBM-bound kernel: halves weight bytes), f32 accumulation.
    w_mu_bf16 = w_mu.astype(jnp.bfloat16)
    w_var_bf16 = w_var.astype(jnp.bfloat16)

    r = bayesian_linear_forward(x, w_mu_bf16, w_var_bf16, b_mu, b_var, zeta,
                                tm=tm, tn=tn, tk=tk)
    jax.block_until_ready(r)

    # Pure-JAX reference of the same math with the same bf16-rounded operands.
    xb = x.astype(jnp.bfloat16).astype(jnp.float32)
    x2b = (x * x).astype(jnp.bfloat16).astype(jnp.float32)
    gamma_ref = xb @ w_mu_bf16.astype(jnp.float32) + b_mu
    delta_ref = x2b @ w_var_bf16.astype(jnp.float32) + b_var
    r_ref = gamma_ref + jnp.sqrt(jnp.maximum(delta_ref, 0.0)) * zeta

    assert r.shape == (batch, fan_out)
    assert jnp.allclose(r, r_ref, atol=5e-3, rtol=5e-3), (
        float(jnp.max(jnp.abs(r - r_ref))))

    print("KERNEL_OK")
</pallas_src>

<mosaic_0001>
module attributes {stable_mosaic.version = 11 : i64} {
  func.func @_bayes_linear_kernel(%arg0: i32, %arg1: i32, %arg2: i32, %arg3: memref<8x128xf32, #tpu.memory_space<vmem>>, %arg4: memref<128x128xbf16, #tpu.memory_space<vmem>>, %arg5: memref<128x128xbf16, #tpu.memory_space<vmem>>, %arg6: memref<1x128xf32, #tpu.memory_space<vmem>>, %arg7: memref<1x128xf32, #tpu.memory_space<vmem>>, %arg8: memref<1x128xf32, #tpu.memory_space<vmem>>, %arg9: memref<8x128xf32, #tpu.memory_space<vmem>>, %arg10: memref<8x128xf32, #tpu.memory_space<vmem>>, %arg11: memref<8x128xf32, #tpu.memory_space<vmem>>) attributes {dimension_semantics = [#tpu.dimension_semantics<parallel>, #tpu.dimension_semantics<parallel>, #tpu.dimension_semantics<arbitrary>], iteration_bounds = array<i64: 2, 3, 2>, scalar_prefetch = 0 : i64, scratch_operands = 2 : i64, tpu.core_type = #tpu.core_type<tc>, window_params = [{transform_indices = @transform_0, window_bounds = array<i64: 8, 128>}, {transform_indices = @transform_1, window_bounds = array<i64: 128, 128>}, {transform_indices = @transform_2, window_bounds = array<i64: 128, 128>}, {transform_indices = @transform_3, window_bounds = array<i64: 1, 128>}, {transform_indices = @transform_4, window_bounds = array<i64: 1, 128>}, {transform_indices = @transform_5, window_bounds = array<i64: 1, 128>}, {transform_indices = @transform_6, window_bounds = array<i64: 8, 128>}]} {
    %c0_i32 = arith.constant 0 : i32
    %0 = arith.cmpi eq, %arg2, %c0_i32 : i32
    %1 = arith.extui %0 : i1 to i32
    %c0_i32_0 = arith.constant 0 : i32
    %2 = arith.cmpi ne, %1, %c0_i32_0 : i32
    scf.if %2 {
      %cst_16 = arith.constant 0.000000e+00 : f32
      %20 = vector.broadcast %cst_16 : f32 to vector<8x128xf32>
      %c0_17 = arith.constant 0 : index
      %c0_18 = arith.constant 0 : index
      %21 = vector.load %arg6[%c0_17, %c0_18] : memref<1x128xf32, #tpu.memory_space<vmem>>, vector<1x128xf32>
      %22 = vector.broadcast %21 : vector<1x128xf32> to vector<8x128xf32>
      %23 = arith.addf %20, %22 : vector<8x128xf32>
      %c0_19 = arith.constant 0 : index
      %c0_20 = arith.constant 0 : index
      %24 = vector.load %arg10[%c0_19, %c0_20] : memref<8x128xf32, #tpu.memory_space<vmem>>, vector<8x128xf32>
      tpu.vector_store %arg10[%c0_19, %c0_20], %23 {strides = array<i32>} : memref<8x128xf32, #tpu.memory_space<vmem>>, vector<8x128xf32>,
      %c0_21 = arith.constant 0 : index
      %c0_22 = arith.constant 0 : index
      %25 = vector.load %arg7[%c0_21, %c0_22] : memref<1x128xf32, #tpu.memory_space<vmem>>, vector<1x128xf32>
      %26 = vector.broadcast %25 : vector<1x128xf32> to vector<8x128xf32>
      %27 = arith.addf %20, %26 : vector<8x128xf32>
      %c0_23 = arith.constant 0 : index
      %c0_24 = arith.constant 0 : index
      %28 = vector.load %arg11[%c0_23, %c0_24] : memref<8x128xf32, #tpu.memory_space<vmem>>, vector<8x128xf32>
      tpu.vector_store %arg11[%c0_23, %c0_24], %27 {strides = array<i32>} : memref<8x128xf32, #tpu.memory_space<vmem>>, vector<8x128xf32>,
    } else {
    }
    %c0 = arith.constant 0 : index
    %c0_1 = arith.constant 0 : index
    %3 = vector.load %arg3[%c0, %c0_1] : memref<8x128xf32, #tpu.memory_space<vmem>>, vector<8x128xf32>
    %4 = arith.truncf %3 : vector<8x128xf32> to vector<8x128xbf16>
    %5 = arith.mulf %3, %3 : vector<8x128xf32>
    %6 = arith.truncf %5 : vector<8x128xf32> to vector<8x128xbf16>
    %c0_2 = arith.constant 0 : index
    %c0_3 = arith.constant 0 : index
    %7 = vector.load %arg10[%c0_2, %c0_3] : memref<8x128xf32, #tpu.memory_space<vmem>>, vector<8x128xf32>
    %c0_4 = arith.constant 0 : index
    %c0_5 = arith.constant 0 : index
    %8 = vector.load %arg4[%c0_4, %c0_5] : memref<128x128xbf16, #tpu.memory_space<vmem>>, vector<128x128xbf16>
    %cst = arith.constant dense<0.000000e+00> : vector<8x128xf32>
    %9 = tpu.matmul %4, %8, %cst {dimension_numbers = #tpu.dot_dimension_numbers<[1], [0], [0], [1], [0, 0, 1, 1], [], []>} : vector<8x128xbf16>, vector<128x128xbf16>, vector<8x128xf32> -> vector<8x128xf32>
    %10 = arith.addf %7, %9 : vector<8x128xf32>
    %c0_6 = arith.constant 0 : index
    %c0_7 = arith.constant 0 : index
    %11 = vector.load %arg10[%c0_6, %c0_7] : memref<8x128xf32, #tpu.memory_space<vmem>>, vector<8x128xf32>
    tpu.vector_store %arg10[%c0_6, %c0_7], %10 {strides = array<i32>} : memref<8x128xf32, #tpu.memory_space<vmem>>, vector<8x128xf32>,
    %c0_8 = arith.constant 0 : index
    %c0_9 = arith.constant 0 : index
    %12 = vector.load %arg11[%c0_8, %c0_9] : memref<8x128xf32, #tpu.memory_space<vmem>>, vector<8x128xf32>
    %c0_10 = arith.constant 0 : index
    %c0_11 = arith.constant 0 : index
    %13 = vector.load %arg5[%c0_10, %c0_11] : memref<128x128xbf16, #tpu.memory_space<vmem>>, vector<128x128xbf16>
    %cst_12 = arith.constant dense<0.000000e+00> : vector<8x128xf32>
    %14 = tpu.matmul %6, %13, %cst_12 {dimension_numbers = #tpu.dot_dimension_numbers<[1], [0], [0], [1], [0, 0, 1, 1], [], []>} : vector<8x128xbf16>, vector<128x128xbf16>, vector<8x128xf32> -> vector<8x128xf32>
    %15 = arith.addf %12, %14 : vector<8x128xf32>
    %c0_13 = arith.constant 0 : index
    %c0_14 = arith.constant 0 : index
    %16 = vector.load %arg11[%c0_13, %c0_14] : memref<8x128xf32, #tpu.memory_space<vmem>>, vector<8x128xf32>
    tpu.vector_store %arg11[%c0_13, %c0_14], %15 {strides = array<i32>} : memref<8x128xf32, #tpu.memory_space<vmem>>, vector<8x128xf32>,
    %c1_i32 = arith.constant 1 : i32
    %17 = arith.cmpi eq, %arg2, %c1_i32 : i32
    %18 = arith.extui %17 : i1 to i32
    %c0_i32_15 = arith.constant 0 : i32
    %19 = arith.cmpi ne, %18, %c0_i32_15 : i32
    scf.if %19 {
      %c0_16 = arith.constant 0 : index
      %c0_17 = arith.constant 0 : index
      %20 = vector.load %arg11[%c0_16, %c0_17] : memref<8x128xf32, #tpu.memory_space<vmem>>, vector<8x128xf32>
      %cst_18 = arith.constant 0.000000e+00 : f32
      %21 = vector.broadcast %cst_18 : f32 to vector<8x128xf32>
      %22 = arith.maximumf %20, %21 : vector<8x128xf32>
      %c0_19 = arith.constant 0 : index
      %c0_20 = arith.constant 0 : index
      %23 = vector.load %arg10[%c0_19, %c0_20] : memref<8x128xf32, #tpu.memory_space<vmem>>, vector<8x128xf32>
      %24 = math.sqrt %22 : vector<8x128xf32>
      %c0_21 = arith.constant 0 : index
      %c0_22 = arith.constant 0 : index
      %25 = vector.load %arg8[%c0_21, %c0_22] : memref<1x128xf32, #tpu.memory_space<vmem>>, vector<1x128xf32>
      %26 = vector.broadcast %25 : vector<1x128xf32> to vector<8x128xf32>
      %27 = arith.mulf %24, %26 : vector<8x128xf32>
      %28 = arith.addf %23, %27 : vector<8x128xf32>
      %c0_23 = arith.constant 0 : index
      %c0_24 = arith.constant 0 : index
      %29 = vector.load %arg9[%c0_23, %c0_24] : memref<8x128xf32, #tpu.memory_space<vmem>>, vector<8x128xf32>
      tpu.vector_store %arg9[%c0_23, %c0_24], %28 {strides = array<i32>} : memref<8x128xf32, #tpu.memory_space<vmem>>, vector<8x128xf32>,
    } else {
    }
    return
  }
  func.func @transform_0(%arg0: i32, %arg1: i32, %arg2: i32) -> (i32, i32) {
    %c0_i32 = arith.constant 0 : i32
    return %arg0, %arg2 : i32, i32
  }
  func.func @transform_1(%arg0: i32, %arg1: i32, %arg2: i32) -> (i32, i32) {
    %c0_i32 = arith.constant 0 : i32
    return %arg2, %arg1 : i32, i32
  }
  func.func @transform_2(%arg0: i32, %arg1: i32, %arg2: i32) -> (i32, i32) {
    %c0_i32 = arith.constant 0 : i32
    return %arg2, %arg1 : i32, i32
  }
  func.func @transform_3(%arg0: i32, %arg1: i32, %arg2: i32) -> (i32, i32) {
    %c0_i32 = arith.constant 0 : i32
    %c0_i32_0 = arith.constant 0 : i32
    return %c0_i32, %arg1 : i32, i32
  }
  func.func @transform_4(%arg0: i32, %arg1: i32, %arg2: i32) -> (i32, i32) {
    %c0_i32 = arith.constant 0 : i32
    %c0_i32_0 = arith.constant 0 : i32
    return %c0_i32, %arg1 : i32, i32
  }
  func.func @transform_5(%arg0: i32, %arg1: i32, %arg2: i32) -> (i32, i32) {
    %c0_i32 = arith.constant 0 : i32
    %c0_i32_0 = arith.constant 0 : i32
    return %c0_i32, %arg1 : i32, i32
  }
  func.func @transform_6(%arg0: i32, %arg1: i32, %arg2: i32) -> (i32, i32) {
    %c0_i32 = arith.constant 0 : i32
    return %arg0, %arg1 : i32, i32
  }
}

</mosaic_0001>

<llo_original>
// kernel: tpu_custom_call.1
$region0: #{tpu_custom_call.1}
  #allocation0 [shape = 'u32[]', space=smem, size = 0x4, offset = 0x4, fixed_abs, tag = 'smem constant byte address 0x4 - core index']
  #allocation1 [shape = 'u32[144,128]{1,0:T(1,128)}', space=vmem, size = 0x12000, scoped, tag = 'internal scratch']
  #allocation2 [shape = 'f32[8,128]{1,0:T(8,128)}', space=vmem, size = 0x1000, scoped, tag = 'scratch operand']
  #allocation3 [shape = 'f32[8,128]{1,0:T(8,128)}', space=vmem, size = 0x1000, scoped, tag = 'scratch operand']
  %s0 = inlined_call_operand.hbm [shape: f32[16,256], index: 0, kind: input, shape index: {}]
  %s1 = inlined_call_operand.hbm [shape: bf16[256,384], index: 1, kind: input, shape index: {}]
  %s2 = inlined_call_operand.hbm [shape: bf16[256,384], index: 2, kind: input, shape index: {}]
  %s3 = inlined_call_operand.vmem [shape: f32[1,384], index: 3, kind: input, shape index: {}]
  %s4 = inlined_call_operand.vmem [shape: f32[1,384], index: 4, kind: input, shape index: {}]
  %s5 = inlined_call_operand.vmem [shape: f32[1,384], index: 5, kind: input, shape index: {}]
  %s6 = inlined_call_operand.hbm [shape: f32[16,384], index: 6, kind: output, shape index: {}]
  %s7 = sld [smem:[#allocation0]]
  $region77: #{tpu_custom_call.1} parent=0
    _
  %s9 = ssub.s32 1, %s7
  %s10 = scalar_select 0, %s9, %s7
  $region1: #{tpu_custom_call.1} parent=0
    #allocation4 [shape = 'u8[8192]{0}', space=vmem, size = 0x2000, scoped, tag = 'input window, operand 0']
    #allocation5 [shape = 's32[2]{0}', space=sflag, size = 0x8, scoped, tag = 'scoped memory for tpu_custom_call.1']
    #allocation6 [shape = 's32[2]{0}', space=sflag, size = 0x8, scoped, tag = 'scoped memory for tpu_custom_call.1']
    #allocation7 [shape = 'u8[65536]{0}', space=vmem, size = 0x10000, scoped, tag = 'input window, operand 1']
    #allocation8 [shape = 's32[2]{0}', space=sflag, size = 0x8, scoped, tag = 'scoped memory for tpu_custom_call.1']
    #allocation9 [shape = 'u8[65536]{0}', space=vmem, size = 0x10000, scoped, tag = 'input window, operand 2']
    #allocation10 [shape = 'u8[8192]{0}', space=vmem, size = 0x2000, scoped, tag = 'output window, operand 0']
    %11 = vsyncpa [#allocation5], 0
    %s12 = scalar_lea.sflag [#allocation5], 1
    %13 = vsyncpa %s12, 0
    %14 = vsyncpa [#allocation8], 0
    %s15 = scalar_lea.sflag [#allocation8], 1
    %16 = vsyncpa %s15, 0
    %17 = vsyncpa [#allocation6], 0
    %s18 = scalar_lea.sflag [#allocation6], 1
    %19 = vsyncpa %s18, 0
    loop: start=0, step=1, limit=14
    $region2: #{tpu_custom_call.1} parent=1 // loop_pre_header
      _
    $region3: #{tpu_custom_call.1} parent=1 // loop_header
      %s21 = sphi 0, %s25
      %p22 = scmp.ge.s32.totalorder %s21, 14
      %s28 = sphi 0, %s47
      %s29 = sphi 0, %s43
      %s30 = sphi 0, %s39
      %s31 = sphi 0, %s28
      %s32 = sphi 0, %s29
      %s33 = sphi 0, %s30
      %s34 = sphi 0, %s31
      %s35 = sphi 0, %s32
      %s36 = sphi 0, %s33
      %s52 = sphi 0, %s54
      %s55 = sphi 0, %s52
      %s56 = sphi 0, %s55
      %s72 = sphi 0, %s56
      %s80 = sphi 0, %s82
      %s83 = sphi 0, %s80
      %s84 = sphi 0, %s83
      %s100 = sphi 0, %s84
      %s108 = sphi 0, %s110
      %s111 = sphi 0, %s108
      %s112 = sphi 0, %s111
      %s128 = sphi 0, %s112
      %s134 = sphi 0, %s136
      %s137 = sphi 0, %s134
      %s138 = sphi 0, %s137
      %s154 = sphi 0, %s138
      %s160 = sphi 0, %s162
      %s163 = sphi 0, %s160
      %s164 = sphi 0, %s163
      %s180 = sphi 0, %s164
      %s186 = sphi 0, %s188
      %s189 = sphi 0, %s186
      %s190 = sphi 0, %s189
      %s206 = sphi 0, %s190
      %s214 = sphi 0, %s216
      %s217 = sphi 0, %s214
      %s218 = sphi 0, %s217
      %s234 = sphi 0, %s218
    $region4: #{tpu_custom_call.1} parent=1 // loop_header_branch
      %24 = sbr.rel (%p22) target = $region8
    $region5: #{tpu_custom_call.1} parent=1 // loop_body
      %s26 = ssub.s32 %s21, 1
      %s27 = ssub.s32 %s21, 2
      %s37 = sadd.s32 1, %s30
      %p38 = scmp.ge.s32.totalorder %s37, 2
      %s39 = scalar_select %p38, 0, %s37
      %s40 = sadd.s32 1, %s29
      %s41 = scalar_select %p38, %s40, %s29
      %p42 = scmp.ge.s32.totalorder %s41, 3
      %s43 = scalar_select %p42, 0, %s41
      %s44 = sadd.s32 1, %s28
      %s45 = scalar_select %p42, %s44, %s28
      %p46 = scmp.ge.s32.totalorder %s45, 2
      %s47 = scalar_select %p46, 0, %s45
      %s48 = ssub.s32 %s28, %s47
      %s49 = ssub.s32 %s30, %s39
      %s50 = sor.u32 %s48, %s49
      %p51 = scmp.eq.s32.totalorder %s50, 0
      %s53 = sadd.s32 %s52, 1
      %s54 = scalar_select %p51, %s52, %s53
      %p57 = pneg %p51
      %p58 = scmp.eq.s32.totalorder %s21, 11
      %p59 = por %p57, %p58
      %p60 = scmp.ne.s32.totalorder %s52, %s55
      %p61 = scmp.eq.s32.totalorder %s21, 0
      %p62 = por %p60, %p61
      %p63 = scmp.ne.s32.totalorder %s52, %s55
      %p64 = scmp.eq.s32.totalorder %s26, 11
      %p65 = por %p63, %p64
      %p66 = scmp.ne.s32.totalorder %s55, %s56
      %p67 = scmp.eq.s32.totalorder %s26, 0
      %p68 = por %p66, %p67
      %p69 = scmp.ne.s32.totalorder %s55, %s56
      %p70 = scmp.eq.s32.totalorder %s27, 11
      %p71 = por %p69, %p70
      %p73 = scmp.ne.s32.totalorder %s56, %s72
      %p74 = scmp.eq.s32.totalorder %s27, 0
      %p75 = por %p73, %p74
      %s76 = ssub.s32 %s30, %s39
      %s77 = ssub.s32 %s29, %s43
      %s78 = sor.u32 %s76, %s77
      %p79 = scmp.eq.s32.totalorder %s78, 0
      %s81 = sadd.s32 %s80, 1
      %s82 = scalar_select %p79, %s80, %s81
      %p85 = pneg %p79
      %p86 = scmp.eq.s32.totalorder %s21, 11
      %p87 = por %p85, %p86
      %p88 = scmp.ne.s32.totalorder %s80, %s83
      %p89 = scmp.eq.s32.totalorder %s21, 0
      %p90 = por %p88, %p89
      %p91 = scmp.ne.s32.totalorder %s80, %s83
      %p92 = scmp.eq.s32.totalorder %s26, 11
      %p93 = por %p91, %p92
      %p94 = scmp.ne.s32.totalorder %s83, %s84
      %p95 = scmp.eq.s32.totalorder %s26, 0
      %p96 = por %p94, %p95
      %p97 = scmp.ne.s32.totalorder %s83, %s84
      %p98 = scmp.eq.s32.totalorder %s27, 11
      %p99 = por %p97, %p98
      %p101 = scmp.ne.s32.totalorder %s84, %s100
      %p102 = scmp.eq.s32.totalorder %s27, 0
      %p103 = por %p101, %p102
      %s104 = ssub.s32 %s30, %s39
      %s105 = ssub.s32 %s29, %s43
      %s106 = sor.u32 %s104, %s105
      %p107 = scmp.eq.s32.totalorder %s106, 0
      %s109 = sadd.s32 %s108, 1
      %s110 = scalar_select %p107, %s108, %s109
      %p113 = pneg %p107
      %p114 = scmp.eq.s32.totalorder %s21, 11
      %p115 = por %p113, %p114
      %p116 = scmp.ne.s32.totalorder %s108, %s111
      %p117 = scmp.eq.s32.totalorder %s21, 0
      %p118 = por %p116, %p117
      %p119 = scmp.ne.s32.totalorder %s108, %s111
      %p120 = scmp.eq.s32.totalorder %s26, 11
      %p121 = por %p119, %p120
      %p122 = scmp.ne.s32.totalorder %s111, %s112
      %p123 = scmp.eq.s32.totalorder %s26, 0
      %p124 = por %p122, %p123
      %p125 = scmp.ne.s32.totalorder %s111, %s112
      %p126 = scmp.eq.s32.totalorder %s27, 11
      %p127 = por %p125, %p126
      %p129 = scmp.ne.s32.totalorder %s112, %s128
      %p130 = scmp.eq.s32.totalorder %s27, 0
      %p131 = por %p129, %p130
      %s132 = ssub.s32 %s29, %s43
      %p133 = scmp.eq.s32.totalorder %s132, 0
      %s135 = sadd.s32 %s134, 1
      %s136 = scalar_select %p133, %s134, %s135
      %p139 = pneg %p133
      %p140 = scmp.eq.s32.totalorder %s21, 11
      %p141 = por %p139, %p140
      %p142 = scmp.ne.s32.totalorder %s134, %s137
      %p143 = scmp.eq.s32.totalorder %s21, 0
      %p144 = por %p142, %p143
      %p145 = scmp.ne.s32.totalorder %s134, %s137
      %p146 = scmp.eq.s32.totalorder %s26, 11
      %p147 = por %p145, %p146
      %p148 = scmp.ne.s32.totalorder %s137, %s138
      %p149 = scmp.eq.s32.totalorder %s26, 0
      %p150 = por %p148, %p149
      %p151 = scmp.ne.s32.totalorder %s137, %s138
      %p152 = scmp.eq.s32.totalorder %s27, 11
      %p153 = por %p151, %p152
      %p155 = scmp.ne.s32.totalorder %s138, %s154
      %p156 = scmp.eq.s32.totalorder %s27, 0
      %p157 = por %p155, %p156
      %s158 = ssub.s32 %s29, %s43
      %p159 = scmp.eq.s32.totalorder %s158, 0
      %s161 = sadd.s32 %s160, 1
      %s162 = scalar_select %p159, %s160, %s161
      %p165 = pneg %p159
      %p166 = scmp.eq.s32.totalorder %s21, 11
      %p167 = por %p165, %p166
      %p168 = scmp.ne.s32.totalorder %s160, %s163
      %p169 = scmp.eq.s32.totalorder %s21, 0
      %p170 = por %p168, %p169
      %p171 = scmp.ne.s32.totalorder %s160, %s163
      %p172 = scmp.eq.s32.totalorder %s26, 11
      %p173 = por %p171, %p172
      %p174 = scmp.ne.s32.totalorder %s163, %s164
      %p175 = scmp.eq.s32.totalorder %s26, 0
      %p176 = por %p174, %p175
      %p177 = scmp.ne.s32.totalorder %s163, %s164
      %p178 = scmp.eq.s32.totalorder %s27, 11
      %p179 = por %p177, %p178
      %p181 = scmp.ne.s32.totalorder %s164, %s180
      %p182 = scmp.eq.s32.totalorder %s27, 0
      %p183 = por %p181, %p182
      %s184 = ssub.s32 %s29, %s43
      %p185 = scmp.eq.s32.totalorder %s184, 0
      %s187 = sadd.s32 %s186, 1
      %s188 = scalar_select %p185, %s186, %s187
      %p191 = pneg %p185
      %p192 = scmp.eq.s32.totalorder %s21, 11
      %p193 = por %p191, %p192
      %p194 = scmp.ne.s32.totalorder %s186, %s189
      %p195 = scmp.eq.s32.totalorder %s21, 0
      %p196 = por %p194, %p195
      %p197 = scmp.ne.s32.totalorder %s186, %s189
      %p198 = scmp.eq.s32.totalorder %s26, 11
      %p199 = por %p197, %p198
      %p200 = scmp.ne.s32.totalorder %s189, %s190
      %p201 = scmp.eq.s32.totalorder %s26, 0
      %p202 = por %p200, %p201
      %p203 = scmp.ne.s32.totalorder %s189, %s190
      %p204 = scmp.eq.s32.totalorder %s27, 11
      %p205 = por %p203, %p204
      %p207 = scmp.ne.s32.totalorder %s190, %s206
      %p208 = scmp.eq.s32.totalorder %s27, 0
      %p209 = por %p207, %p208
      %s210 = ssub.s32 %s28, %s47
      %s211 = ssub.s32 %s29, %s43
      %s212 = sor.u32 %s210, %s211
      %p213 = scmp.eq.s32.totalorder %s212, 0
      %s215 = sadd.s32 %s214, 1
      %s216 = scalar_select %p213, %s214, %s215
      %p219 = pneg %p213
      %p220 = scmp.eq.s32.totalorder %s21, 11
      %p221 = por %p219, %p220
      %p222 = scmp.ne.s32.totalorder %s214, %s217
      %p223 = scmp.eq.s32.totalorder %s21, 0
      %p224 = por %p222, %p223
      %p225 = scmp.ne.s32.totalorder %s214, %s217
      %p226 = scmp.eq.s32.totalorder %s26, 11
      %p227 = por %p225, %p226
      %p228 = scmp.ne.s32.totalorder %s217, %s218
      %p229 = scmp.eq.s32.totalorder %s26, 0
      %p230 = por %p228, %p229
      %p231 = scmp.ne.s32.totalorder %s217, %s218
      %p232 = scmp.eq.s32.totalorder %s27, 11
      %p233 = por %p231, %p232
      %p235 = scmp.ne.s32.totalorder %s218, %s234
      %p236 = scmp.eq.s32.totalorder %s27, 0
      %p237 = por %p235, %p236
      %p238 = scmp.le.s32.totalorder 1, %s21
      %p239 = scmp.lt.s32.totalorder %s21, 13
      %p240 = pnand %p238, %p239
      %p241 = pneg %p240
      // Predicated region
      $region9: #{tpu_custom_call.1} parent=5 // pred_check
        _
      $region10: #{tpu_custom_call.1} parent=5 // pred_check_branch
        %243 = sbr.rel (%p240) target = $region12
      $region11: #{tpu_custom_call.1} parent=5 // pred_region
        %s244 = ssub.s32 %s21, 1
      $region12: #{tpu_custom_call.1} parent=5 // pred_fallthru
        _
      %p245 = scmp.lt.s32.totalorder %s21, 12
      // Predicated region
      $region13: #{tpu_custom_call.1} parent=5 // pred_check
        %p246 = pneg %p245
      $region14: #{tpu_custom_call.1} parent=5 // pred_check_branch
        %248 = sbr.rel (%p246) target = $region16
      $region15: #{tpu_custom_call.1} parent=5 // pred_region
        // Predicated region
        $region17: #{tpu_custom_call.1} parent=15 // pred_check
          %p249 = pneg %p62
        $region18: #{tpu_custom_call.1} parent=15 // pred_check_branch
          %251 = sbr.rel (%p249) target = $region20
        $region19: #{tpu_custom_call.1} parent=15 // pred_region
          %s252 = sand.u32 %s52, 1
          %s253 = scalar_lea.sflag [#allocation5], %s252
          %s254 = sand.u32 %s52, 1
          %s255 = smul.addr %s254, 8
          %s256 = scalar_lea.vmem [#allocation4], %s255
          %s258 = ssub.s32 128, 128
          %259 = vsyncadd %s253, %s258
          %s260 = smul.addr %s28, 2
          %s261 = sadd.s32 %s30, %s260
          %s262 = smul.addr %s261, 128
          %s263 = scalar_lea.hbm %s0, %s262
          %s265 = sshll.u32 %s256, 4
          %s266 = int_to_ptr.vmem [resolvable:$true] %s265
          %268 = dma.hbm_to_vmem [thread:$0]  %s263, 128, %s266, %s253
        $region20: #{tpu_custom_call.1} parent=15 // pred_fallthru
          _
        // Predicated region
        $region21: #{tpu_custom_call.1} parent=15 // pred_check
          %p269 = pneg %p90
        $region22: #{tpu_custom_call.1} parent=15 // pred_check_branch
          %271 = sbr.rel (%p269) target = $region24
        $region23: #{tpu_custom_call.1} parent=15 // pred_region
          %s272 = sand.u32 %s21, 1
          %s273 = scalar_lea.sflag [#allocation8], %s272
          %s274 = sand.u32 %s80, 1
          %s275 = smul.addr %s274, 64
          %s276 = scalar_lea.vmem [#allocation7], %s275
          %s277 = smul.u32 16, %s30
          %s279 = ssub.s32 1024, 1024
          %280 = vsyncadd %s273, %s279
          %s281 = smul.addr %s277, 3
          %s282 = sadd.s32 %s29, %s281
          %s283 = smul.addr %s282, 64
          %s284 = scalar_lea.hbm %s1, %s283
          %s285 = sshll.u32 %s276, 4
          %s286 = int_to_ptr.vmem [resolvable:$true] %s285
          %291 = dma.hbm_to_vmem [thread:$0]  %s284, 1024, %s286, %s273, 192, 64, 4
        $region24: #{tpu_custom_call.1} parent=15 // pred_fallthru
          _
        // Predicated region
        $region25: #{tpu_custom_call.1} parent=15 // pred_check
          %p292 = pneg %p118
        $region26: #{tpu_custom_call.1} parent=15 // pred_check_branch
          %294 = sbr.rel (%p292) target = $region28
        $region27: #{tpu_custom_call.1} parent=15 // pred_region
          %s295 = sand.u32 %s21, 1
          %s296 = scalar_lea.sflag [#allocation8], %s295
          %s297 = sand.u32 %s108, 1
          %s298 = smul.addr %s297, 64
          %s299 = scalar_lea.vmem [#allocation9], %s298
          %s300 = smul.u32 16, %s30
          %s302 = ssub.s32 1024, 1024
          %303 = vsyncadd %s296, %s302
          %s304 = smul.addr %s300, 3
          %s305 = sadd.s32 %s29, %s304
          %s306 = smul.addr %s305, 64
          %s307 = scalar_lea.hbm %s2, %s306
          %s308 = sshll.u32 %s299, 4
          %s309 = int_to_ptr.vmem [resolvable:$true] %s308
          %314 = dma.hbm_to_vmem [thread:$0]  %s307, 1024, %s309, %s296, 192, 64, 4
        $region28: #{tpu_custom_call.1} parent=15 // pred_fallthru
          _
        // Predicated region
        $region29: #{tpu_custom_call.1} parent=15 // pred_check
          %p315 = pneg %p144
        $region30: #{tpu_custom_call.1} parent=15 // pred_check_branch
          %317 = sbr.rel (%p315) target = $region32
        $region31: #{tpu_custom_call.1} parent=15 // pred_region
          %p318 = scmp.lt.s32.totalorder %s29, 2
          %s319 = scalar_select %p318, %s29, 2
          %s320 = scalar_lea.vmem %s3, %s319
        $region32: #{tpu_custom_call.1} parent=15 // pred_fallthru
          _
        // Predicated region
        $region33: #{tpu_custom_call.1} parent=15 // pred_check
          %p321 = pneg %p170
        $region34: #{tpu_custom_call.1} parent=15 // pred_check_branch
          %323 = sbr.rel (%p321) target = $region36
        $region35: #{tpu_custom_call.1} parent=15 // pred_region
          %p324 = scmp.lt.s32.totalorder %s29, 2
          %s325 = scalar_select %p324, %s29, 2
          %s326 = scalar_lea.vmem %s4, %s325
        $region36: #{tpu_custom_call.1} parent=15 // pred_fallthru
          _
        // Predicated region
        $region37: #{tpu_custom_call.1} parent=15 // pred_check
          %p327 = pneg %p196
        $region38: #{tpu_custom_call.1} parent=15 // pred_check_branch
          %329 = sbr.rel (%p327) target = $region40
        $region39: #{tpu_custom_call.1} parent=15 // pred_region
          %p330 = scmp.lt.s32.totalorder %s29, 2
          %s331 = scalar_select %p330, %s29, 2
          %s332 = scalar_lea.vmem %s5, %s331
        $region40: #{tpu_custom_call.1} parent=15 // pred_fallthru
          _
      $region16: #{tpu_custom_call.1} parent=5 // pred_fallthru
        _
      %p333 = scmp.le.s32.totalorder 1, %s21
      %p334 = scmp.lt.s32.totalorder %s21, 13
      %p335 = pnand %p333, %p334
      %p336 = pneg %p335
      // Predicated region
      $region41: #{tpu_custom_call.1} parent=5 // pred_check
        _
      $region42: #{tpu_custom_call.1} parent=5 // pred_check_branch
        %338 = sbr.rel (%p335) target = $region44
      $region43: #{tpu_custom_call.1} parent=5 // pred_region
        %s339 = ssub.s32 %s21, 1
        %s340 = sand.u32 %s55, 1
        %s341 = scalar_lea.sflag [#allocation5], %s340
        %s342 = sand.u32 %s55, 1
        %s343 = smul.addr %s342, 8
        %s344 = scalar_lea.vmem [#allocation4], %s343
        // Predicated region
        $region45: #{tpu_custom_call.1} parent=43 // pred_check
          %p345 = pneg %p68
        $region46: #{tpu_custom_call.1} parent=43 // pred_check_branch
          %347 = sbr.rel (%p345) target = $region48
        $region47: #{tpu_custom_call.1} parent=43 // pred_region
          %348 = dma.done %s341, 128
        $region48: #{tpu_custom_call.1} parent=43 // pred_fallthru
          _
        %s349 = sand.u32 %s26, 1
        %s350 = scalar_lea.sflag [#allocation8], %s349
        %s351 = sand.u32 %s83, 1
        %s352 = smul.addr %s351, 64
        %s353 = scalar_lea.vmem [#allocation7], %s352
        // Predicated region
        $region49: #{tpu_custom_call.1} parent=43 // pred_check
          %p354 = pneg %p96
        $region50: #{tpu_custom_call.1} parent=43 // pred_check_branch
          %356 = sbr.rel (%p354) target = $region52
        $region51: #{tpu_custom_call.1} parent=43 // pred_region
          %357 = dma.done %s350, 1024
        $region52: #{tpu_custom_call.1} parent=43 // pred_fallthru
          _
        %s358 = sand.u32 %s26, 1
        %s359 = scalar_lea.sflag [#allocation8], %s358
        %s360 = sand.u32 %s111, 1
        %s361 = smul.addr %s360, 64
        %s362 = scalar_lea.vmem [#allocation9], %s361
        // Predicated region
        $region53: #{tpu_custom_call.1} parent=43 // pred_check
          %p363 = pneg %p124
        $region54: #{tpu_custom_call.1} parent=43 // pred_check_branch
          %365 = sbr.rel (%p363) target = $region56
        $region55: #{tpu_custom_call.1} parent=43 // pred_region
          %366 = dma.done %s359, 1024
        $region56: #{tpu_custom_call.1} parent=43 // pred_fallthru
          _
        %s367 = sand.u32 %s55, 1
        %s368 = scalar_lea.sflag [#allocation5], %s367
        %s369 = sand.u32 %s55, 1
        %s370 = smul.addr %s369, 8
        %s371 = scalar_lea.vmem [#allocation4], %s370
        %p372 = pneg %p68
        %p373 = pneg %p65
        %s374 = sand.u32 %s26, 1
        %s375 = scalar_lea.sflag [#allocation8], %s374
        %s376 = sand.u32 %s83, 1
        %s377 = smul.addr %s376, 64
        %s378 = scalar_lea.vmem [#allocation7], %s377
        %p379 = pneg %p96
        %p380 = pneg %p93
        %s381 = sand.u32 %s26, 1
        %s382 = scalar_lea.sflag [#allocation8], %s381
        %s383 = sand.u32 %s111, 1
        %s384 = smul.addr %s383, 64
        %s385 = scalar_lea.vmem [#allocation9], %s384
        %p386 = pneg %p124
        %p387 = pneg %p121
        %p388 = scmp.lt.s32.totalorder %s32, 2
        %s389 = scalar_select %p388, %s32, 2
        %s390 = scalar_lea.vmem %s3, %s389
        %p391 = pneg %p150
        %p392 = pneg %p147
        %p393 = scmp.lt.s32.totalorder %s32, 2
        %s394 = scalar_select %p393, %s32, 2
        %s395 = scalar_lea.vmem %s4, %s394
        %p396 = pneg %p176
        %p397 = pneg %p173
        %p398 = scmp.lt.s32.totalorder %s32, 2
        %s399 = scalar_select %p398, %s32, 2
        %s400 = scalar_lea.vmem %s5, %s399
        %p401 = pneg %p202
        %p402 = pneg %p199
        %p403 = pneg %p230
        %p404 = pneg %p227
        %s405 = sand.u32 %s217, 1
        %s406 = scalar_lea.sflag [#allocation6], %s405
        %s407 = sand.u32 %s217, 1
        %s408 = smul.addr %s407, 8
        %s409 = scalar_lea.vmem [#allocation10], %s408
        %s410 = smul.u32 16, %s33
        %s411 = smul.u32 16, %s33
        %p412 = scmp.lt.s32.totalorder %s32, 2
        %s413 = scalar_select %p412, %s32, 2
        %s414 = scalar_lea.vmem %s3, %s413
        %p415 = scmp.lt.s32.totalorder %s32, 2
        %s416 = scalar_select %p415, %s32, 2
        %s417 = scalar_lea.vmem %s4, %s416
        %p418 = scmp.lt.s32.totalorder %s32, 2
        %s419 = scalar_select %p418, %s32, 2
        %s420 = scalar_lea.vmem %s5, %s419
        %p422 = scmp.eq.s32.totalorder %s33, 0
        // Predicated region
        $region57: #{tpu_custom_call.1} parent=43 // pred_check
          %p423 = pneg %p422
        $region58: #{tpu_custom_call.1} parent=43 // pred_check_branch
          %425 = sbr.rel (%p423) target = $region60
        $region59: #{tpu_custom_call.1} parent=43 // pred_region
          %v426 = vld [vmem:[%s414] sm:$0x1]
          %v428 = vlaneseq
          %v429 = vshrl.u32 %v428, 7
          %v430 = vsub.s32 0, %v429
          %v431 = vrot.slane %v426, %v430
          %v433 = vadd.f32 %v431, 0.0
          %434 = vst [vmem:[#allocation2] sm:$0xff] %v433
          %v435 = vld [vmem:[%s417] sm:$0x1]
          %v437 = vlaneseq
          %v438 = vshrl.u32 %v437, 7
          %v439 = vsub.s32 0, %v438
          %v440 = vrot.slane %v435, %v439
          %v442 = vadd.f32 %v440, 0.0
          %443 = vst [vmem:[#allocation3] sm:$0xff] %v442
        $region60: #{tpu_custom_call.1} parent=43 // pred_fallthru
          _
        %v444 = vld [vmem:[%s344] sm:$0xff]
        %v445 = vpack.c.bf16 %v444, %v444
        %v446 = vmul.f32 %v444, %v444
        %v447 = vpack.c.bf16 %v446, %v446
        %v448 = vld [vmem:[#allocation2] sm:$0xff]
        %v449 = vld [vmem:[%s353] sm:$0xf]
        %v450 = vld [vmem:[%s353 + $0x4] sm:$0xf]
        %v451 = vld [vmem:[%s353 + $0x8] sm:$0xf]
        %v452 = vld [vmem:[%s353 + $0xc] sm:$0xf]
        %v453 = vld [vmem:[%s353 + $0x10] sm:$0xf]
        %v454 = vld [vmem:[%s353 + $0x14] sm:$0xf]
        %v455 = vld [vmem:[%s353 + $0x18] sm:$0xf]
        %v456 = vld [vmem:[%s353 + $0x1c] sm:$0xf]
        %v457 = vld [vmem:[%s353 + $0x20] sm:$0xf]
        %v458 = vld [vmem:[%s353 + $0x24] sm:$0xf]
        %v459 = vld [vmem:[%s353 + $0x28] sm:$0xf]
        %v460 = vld [vmem:[%s353 + $0x2c] sm:$0xf]
        %v461 = vld [vmem:[%s353 + $0x30] sm:$0xf]
        %v462 = vld [vmem:[%s353 + $0x34] sm:$0xf]
        %v463 = vld [vmem:[%s353 + $0x38] sm:$0xf]
        %v464 = vld [vmem:[%s353 + $0x3c] sm:$0xf]
        %v481 = vunpack.c.l.b16 %v449
        %v482 = vunpack.c.l.b16 %v450
        %v483 = vunpack.c.l.b16 %v451
        %v484 = vunpack.c.l.b16 %v452
        %v485 = vunpack.c.l.b16 %v453
        %v486 = vunpack.c.l.b16 %v454
        %v487 = vunpack.c.l.b16 %v455
        %v488 = vunpack.c.l.b16 %v456
        %v489 = vunpack.c.l.b16 %v457
        %v490 = vunpack.c.l.b16 %v458
        %v491 = vunpack.c.l.b16 %v459
        %v492 = vunpack.c.l.b16 %v460
        %v493 = vunpack.c.l.b16 %v461
        %v494 = vunpack.c.l.b16 %v462
        %v495 = vunpack.c.l.b16 %v463
        %v496 = vunpack.c.l.b16 %v464
        %v497 = vpack.c.b16 %v482, %v481
        %v498 = vpack.c.b16 %v484, %v483
        %v499 = vpack.c.b16 %v486, %v485
        %v500 = vpack.c.b16 %v488, %v487
        %v501 = vpack.c.b16 %v490, %v489
        %v502 = vpack.c.b16 %v492, %v491
        %v503 = vpack.c.b16 %v494, %v493
        %v504 = vpack.c.b16 %v496, %v495
        %513 = vmatprep.subr.bf16.mxu0 0
        %514 = vmatpush1.bf16.msra.mxu0 %v497
        %515 = vmatprep.subr.bf16.mxu0 0
        %516 = vmatpush1.bf16.msra.mxu0 %v498
        %517 = vmatprep.subr.bf16.mxu0 0
        %518 = vmatpush1.bf16.msra.mxu0 %v499
        %519 = vmatprep.subr.bf16.mxu0 0
        %520 = vmatpush1.bf16.msra.mxu0 %v500
        %521 = vmatprep.subr.bf16.mxu0 0
        %522 = vmatpush1.bf16.msra.mxu0 %v501
        %523 = vmatprep.subr.bf16.mxu0 0
        %524 = vmatpush1.bf16.msra.mxu0 %v502
        %525 = vmatprep.subr.bf16.mxu0 0
        %526 = vmatpush1.bf16.msra.mxu0 %v503
        %527 = vmatprep.subr.bf16.mxu0 0
        %528 = vmatpush1.bf16.msra.mxu0 %v504
        %529 = vmatprep.subr.bf16.mxu0 0
        %530 = vmatpush1.bf16.msra.mxu0 0
        %531 = vmatprep.subr.bf16.mxu0 0
        %532 = vmatpush1.bf16.msra.mxu0 0
        %533 = vmatprep.subr.bf16.mxu0 0
        %534 = vmatpush1.bf16.msra.mxu0 0
        %535 = vmatprep.subr.bf16.mxu0 0
        %536 = vmatpush1.bf16.msra.mxu0 0
        %537 = vmatprep.subr.bf16.mxu0 0
        %538 = vmatpush1.bf16.msra.mxu0 0
        %539 = vmatprep.subr.bf16.mxu0 0
        %540 = vmatpush1.bf16.msra.mxu0 0
        %541 = vmatprep.subr.bf16.mxu0 0
        %542 = vmatpush1.bf16.msra.mxu0 0
        %543 = vmatprep.subr.bf16.mxu0 0
        %544 = vmatpush1.bf16.msra.mxu0 0
        %545 = vmatprep.mubr.bf16.mxu0 0
        %546 = vmatmul.mubr.bf16.gmra.mrb[0].mxu0 %v445
        %v547 = vpop.f32.mrb[0].mxu0
        %v548 = vadd.f32 0.0, %v547
        %v549 = vpop.f32.mrb[0].mxu0
        %v550 = vpop.f32.mrb[0].mxu0
        %v551 = vpop.f32.mrb[0].mxu0
        %552 = vdwg.mxu0
        %v553 = vadd.f32 %v448, %v548
        %554 = vst [vmem:[#allocation2] sm:$0xff] %v553
        %v555 = vld [vmem:[#allocation3] sm:$0xff]
        %v556 = vld [vmem:[%s362] sm:$0xf]
        %v557 = vld [vmem:[%s362 + $0x4] sm:$0xf]
        %v558 = vld [vmem:[%s362 + $0x8] sm:$0xf]
        %v559 = vld [vmem:[%s362 + $0xc] sm:$0xf]
        %v560 = vld [vmem:[%s362 + $0x10] sm:$0xf]
        %v561 = vld [vmem:[%s362 + $0x14] sm:$0xf]
        %v562 = vld [vmem:[%s362 + $0x18] sm:$0xf]
        %v563 = vld [vmem:[%s362 + $0x1c] sm:$0xf]
        %v564 = vld [vmem:[%s362 + $0x20] sm:$0xf]
        %v565 = vld [vmem:[%s362 + $0x24] sm:$0xf]
        %v566 = vld [vmem:[%s362 + $0x28] sm:$0xf]
        %v567 = vld [vmem:[%s362 + $0x2c] sm:$0xf]
        %v568 = vld [vmem:[%s362 + $0x30] sm:$0xf]
        %v569 = vld [vmem:[%s362 + $0x34] sm:$0xf]
        %v570 = vld [vmem:[%s362 + $0x38] sm:$0xf]
        %v571 = vld [vmem:[%s362 + $0x3c] sm:$0xf]
        %v588 = vunpack.c.l.b16 %v556
        %v589 = vunpack.c.l.b16 %v557
        %v590 = vunpack.c.l.b16 %v558
        %v591 = vunpack.c.l.b16 %v559
        %v592 = vunpack.c.l.b16 %v560
        %v593 = vunpack.c.l.b16 %v561
        %v594 = vunpack.c.l.b16 %v562
        %v595 = vunpack.c.l.b16 %v563
        %v596 = vunpack.c.l.b16 %v564
        %v597 = vunpack.c.l.b16 %v565
        %v598 = vunpack.c.l.b16 %v566
        %v599 = vunpack.c.l.b16 %v567
        %v600 = vunpack.c.l.b16 %v568
        %v601 = vunpack.c.l.b16 %v569
        %v602 = vunpack.c.l.b16 %v570
        %v603 = vunpack.c.l.b16 %v571
        %v604 = vpack.c.b16 %v589, %v588
        %v605 = vpack.c.b16 %v591, %v590
        %v606 = vpack.c.b16 %v593, %v592
        %v607 = vpack.c.b16 %v595, %v594
        %v608 = vpack.c.b16 %v597, %v596
        %v609 = vpack.c.b16 %v599, %v598
        %v610 = vpack.c.b16 %v601, %v600
        %v611 = vpack.c.b16 %v603, %v602
        %620 = vmatprep.subr.bf16.mxu0 0
        %621 = vmatpush1.bf16.msra.mxu0 %v604
        %622 = vmatprep.subr.bf16.mxu0 0
        %623 = vmatpush1.bf16.msra.mxu0 %v605
        %624 = vmatprep.subr.bf16.mxu0 0
        %625 = vmatpush1.bf16.msra.mxu0 %v606
        %626 = vmatprep.subr.bf16.mxu0 0
        %627 = vmatpush1.bf16.msra.mxu0 %v607
        %628 = vmatprep.subr.bf16.mxu0 0
        %629 = vmatpush1.bf16.msra.mxu0 %v608
        %630 = vmatprep.subr.bf16.mxu0 0
        %631 = vmatpush1.bf16.msra.mxu0 %v609
        %632 = vmatprep.subr.bf16.mxu0 0
        %633 = vmatpush1.bf16.msra.mxu0 %v610
        %634 = vmatprep.subr.bf16.mxu0 0
        %635 = vmatpush1.bf16.msra.mxu0 %v611
        %636 = vmatprep.subr.bf16.mxu0 0
        %637 = vmatpush1.bf16.msra.mxu0 0
        %638 = vmatprep.subr.bf16.mxu0 0
        %639 = vmatpush1.bf16.msra.mxu0 0
        %640 = vmatprep.subr.bf16.mxu0 0
        %641 = vmatpush1.bf16.msra.mxu0 0
        %642 = vmatprep.subr.bf16.mxu0 0
        %643 = vmatpush1.bf16.msra.mxu0 0
        %644 = vmatprep.subr.bf16.mxu0 0
        %645 = vmatpush1.bf16.msra.mxu0 0
        %646 = vmatprep.subr.bf16.mxu0 0
        %647 = vmatpush1.bf16.msra.mxu0 0
        %648 = vmatprep.subr.bf16.mxu0 0
        %649 = vmatpush1.bf16.msra.mxu0 0
        %650 = vmatprep.subr.bf16.mxu0 0
        %651 = vmatpush1.bf16.msra.mxu0 0
        %652 = vmatprep.mubr.bf16.mxu0 0
        %653 = vmatmul.mubr.bf16.gmra.mrb[0].mxu0 %v447
        %v654 = vpop.f32.mrb[0].mxu0
        %v655 = vadd.f32 0.0, %v654
        %v656 = vpop.f32.mrb[0].mxu0
        %v657 = vpop.f32.mrb[0].mxu0
        %v658 = vpop.f32.mrb[0].mxu0
        %659 = vdwg.mxu0
        %v660 = vadd.f32 %v555, %v655
        %661 = vst [vmem:[#allocation3] sm:$0xff] %v660
        %p662 = scmp.eq.s32.totalorder %s33, 1
        // Predicated region
        $region61: #{tpu_custom_call.1} parent=43 // pred_check
          %p663 = pneg %p662
        $region62: #{tpu_custom_call.1} parent=43 // pred_check_branch
          %665 = sbr.rel (%p663) target = $region64
        $region63: #{tpu_custom_call.1} parent=43 // pred_region
          %v666 = vld [vmem:[#allocation3] sm:$0xff]
          %v667 = vmax.f32 %v666, 0.0
          %v668 = vld [vmem:[#allocation2] sm:$0xff]
          %v669 = vrsqrt.pop %v667
          %v670 = vmul.f32 %v667, %v669
          %vm671 = vcmp.eq.f32.partialorder %v667, inf
          %v672 = vsel %vm671, %v667, %v670
          %vm673 = vcmp.eq.f32.partialorder %v667, 0.0
          %v674 = vand.u32 %v667, 2147483648
          %v675 = vsel %vm673, %v674, %v672
          %v676 = vld [vmem:[%s420] sm:$0x1]
          %v678 = vlaneseq
          %v679 = vshrl.u32 %v678, 7
          %v680 = vsub.s32 0, %v679
          %v681 = vrot.slane %v676, %v680
          %v683 = vmul.f32 %v675, %v681
          %v684 = vadd.f32 %v668, %v683
          %685 = vst [vmem:[%s409] sm:$0xff] %v684
        $region64: #{tpu_custom_call.1} parent=43 // pred_fallthru
          _
        %s686 = sand.u32 %s217, 1
        %s687 = scalar_lea.sflag [#allocation6], %s686
        %s688 = sand.u32 %s217, 1
        %s689 = smul.addr %s688, 8
        %s690 = scalar_lea.vmem [#allocation10], %s689
        // Predicated region
        $region65: #{tpu_custom_call.1} parent=43 // pred_check
          %p691 = pneg %p227
        $region66: #{tpu_custom_call.1} parent=43 // pred_check_branch
          %693 = sbr.rel (%p691) target = $region68
        $region67: #{tpu_custom_call.1} parent=43 // pred_region
          %s695 = ssub.s32 128, 128
          %696 = vsyncadd %s687, %s695
          %s697 = smul.addr %s31, 3
          %s698 = sadd.s32 %s32, %s697
          %s699 = smul.addr %s698, 128
          %s700 = scalar_lea.hbm %s6, %s699
          %s702 = sshll.u32 %s690, 4
          %s703 = int_to_ptr.vmem [resolvable:$true] %s702
          %705 = dma.vmem_to_hbm [thread:$0]  %s703, 128, %s700, %s687
        $region68: #{tpu_custom_call.1} parent=43 // pred_fallthru
          _
      $region44: #{tpu_custom_call.1} parent=5 // pred_fallthru
        _
      %p706 = scmp.le.s32.totalorder 2, %s21
      // Predicated region
      $region69: #{tpu_custom_call.1} parent=5 // pred_check
        %p707 = pneg %p706
      $region70: #{tpu_custom_call.1} parent=5 // pred_check_branch
        %709 = sbr.rel (%p707) target = $region72
      $region71: #{tpu_custom_call.1} parent=5 // pred_region
        %s710 = ssub.s32 %s21, 2
        // Predicated region
        $region73: #{tpu_custom_call.1} parent=71 // pred_check
          %p711 = pneg %p233
        $region74: #{tpu_custom_call.1} parent=71 // pred_check_branch
          %713 = sbr.rel (%p711) target = $region76
        $region75: #{tpu_custom_call.1} parent=71 // pred_region
          %s714 = sand.u32 %s218, 1
          %s715 = scalar_lea.sflag [#allocation6], %s714
          %s716 = sand.u32 %s218, 1
          %s717 = smul.addr %s716, 8
          %s718 = scalar_lea.vmem [#allocation10], %s717
          %719 = dma.done %s715, 128
        $region76: #{tpu_custom_call.1} parent=71 // pred_fallthru
          _
      $region72: #{tpu_custom_call.1} parent=5 // pred_fallthru
        _
    $region6: #{tpu_custom_call.1} parent=1 // loop_footer
      %s25 = sadd.s32 1, %s21
    $region7: #{tpu_custom_call.1} parent=1 // loop_footer_branch
      %20 = sbr.rel target = $region3
    $region8: #{tpu_custom_call.1} parent=1 // loop_exit
      _
    %720 = vsyncpa [#allocation5], 1
    %s721 = scalar_lea.sflag [#allocation5], 1
    %722 = vsyncpa %s721, 1
    %723 = vsyncpa [#allocation8], 1
    %s724 = scalar_lea.sflag [#allocation8], 1
    %725 = vsyncpa %s724, 1
    %726 = vsyncpa [#allocation6], 1
    %s727 = scalar_lea.sflag [#allocation6], 1
    %728 = vsyncpa %s727, 1

</llo_original>
